<compile_context>
chip_gen: v5e
topology: v5e:2x2
jax: 0.10.0
libtpu: 0.0.40
codegen_flags: <defaults>
</compile_context>

<pallas_src>
import functools

import jax
import jax.numpy as jnp
from jax.experimental import pallas as pl
from jax.experimental.pallas import tpu as pltpu


# ---------------------------------------------------------------------------
# Pallas kernel: row-wise layer norm over the last (hidden) dim, no affine.
# ---------------------------------------------------------------------------
def _layer_norm_kernel(x_ref, o_ref, *, eps: float, inv_hidden: float):
    # x_ref / o_ref: (tile_rows, hidden) in VMEM.  Compute in f32 (v5e has no
    # bf16 VPU/EUP).  Single fused pass: row-sum and row-sum-of-squares share
    # one traversal of the tile; no second full-tile f32 `centered` temp.
    x = x_ref[...].astype(jnp.float32)
    s = jnp.sum(x, axis=-1, keepdims=True)
    ss = jnp.sum(x * x, axis=-1, keepdims=True)
    mean = s * inv_hidden
    # E[x^2] - mean^2 can go slightly negative from cancellation; clamp.
    # f32 accumulation; validated against the two-pass reference in __main__.
    var = jnp.maximum(ss * inv_hidden - mean * mean, 0.0)
    inv = jax.lax.rsqrt(var + eps)
    o_ref[...] = ((x - mean) * inv).astype(o_ref.dtype)


# ---------------------------------------------------------------------------
# Tiling / VMEM tuning.
# ---------------------------------------------------------------------------
def _tpu_tuning():
    """Returns (target_block_bytes_f32, vmem_limit_bytes, min_grid_steps).

    v5e / v6e: 128 MiB physical VMEM, 1 TensorCore -> ~8 MiB blocks, 64 MiB
               scoped-VMEM request (only the 16/32 MiB default was in the way).
    v7x:       64 MiB physical VMEM, 2 TensorCores -> ~4 MiB blocks, 48 MiB
               request (headroom for f32 intermediates), >= 2 grid steps so
               the "parallel" row grid shards across both TCs.
    """
    kind = ""
    try:
        kind = jax.devices()[0].device_kind.lower()
    except Exception:  # pragma: no cover - defensive
        pass
    if "v7" in kind:
        return 4 * 1024 * 1024, 48 * 1024 * 1024, 2
    if "v5" in kind or "v6" in kind:
        return 8 * 1024 * 1024, 64 * 1024 * 1024, 1
    # Unknown TPU generation: conservative defaults.
    return 4 * 1024 * 1024, 32 * 1024 * 1024, 1


def _choose_tile_rows(rows: int, hidden: int, dtype,
                      target_block_bytes: int, min_grid_steps: int) -> int:
    """Pick the row-tile size for the (rows, hidden) view."""
    itemsize = jnp.dtype(dtype).itemsize
    sub = max(8, 32 // max(itemsize, 1))  # sublane multiple: 8 f32 / 16 bf16 / 32 i8
    # Budget the f32 intermediates, not just the raw in/out pipeline buffers:
    # sub-f32 inputs are promoted to f32 inside the kernel, so shrink the raw
    # block proportionally (bf16 -> half, int8 -> quarter of the f32 budget).
    block_bytes = max(target_block_bytes * itemsize // 4, hidden * itemsize)
    tile = block_bytes // max(hidden * itemsize, 1)
    tile = max(sub, (tile // sub) * sub)
    # v7x: keep at least `min_grid_steps` grid steps so both TensorCores get
    # work (no-op on single-TC chips and for tiny inputs).
    if min_grid_steps > 1 and rows >= min_grid_steps * sub:
        cap = max(sub, ((rows // min_grid_steps) // sub) * sub)
        tile = min(tile, cap)
    if tile >= rows:
        # Full extent: always a legal block shape and a single-step grid.
        return rows
    # Prefer a divisor of rows (no ragged tail), but never shrink below half
    # the target tile — a masked tail block is far cheaper than a tiny-block
    # grid (~0.35us per step, ~30% of HBM roofline instead of ~85%).
    floor = max(sub, ((tile // 2) // sub) * sub)
    t = tile
    while t >= floor:
        if rows % t == 0:
            return t
        t -= sub
    # Ragged tail: Pallas masks the out-of-bounds writes.  Safe ONLY because
    # the kernel is strictly row-wise (padding rows never touch valid rows).
    return tile


# ---------------------------------------------------------------------------
# Wrapper.
# ---------------------------------------------------------------------------
_PALLAS_MIN_BYTES = 256 * 1024  # below this, pallas_call launch overhead dominates


def _layer_norm_ref(x: jax.Array, eps: float) -> jax.Array:
    xf = x.astype(jnp.float32)
    mean = jnp.mean(xf, axis=-1, keepdims=True)
    var = jnp.mean((xf - mean) ** 2, axis=-1, keepdims=True)
    return ((xf - mean) * jax.lax.rsqrt(var + eps)).astype(x.dtype)


def pallas_layer_norm_last_dim(x: jax.Array, *, eps: float = 1e-5,
                               force_pallas: bool = False) -> jax.Array:
    """LayerNorm over the last dim (no affine), matching
    torch.nn.functional.layer_norm(x, (x.shape[-1],), eps=1e-5)."""
    orig_shape = x.shape
    hidden = int(orig_shape[-1])
    rows = 1
    for d in orig_shape[:-1]:
        rows *= int(d)
    itemsize = jnp.dtype(x.dtype).itemsize

    # Tiny inputs: XLA's fused elementwise path beats the fixed kernel launch
    # overhead — bypass the pallas_call entirely.
    if not force_pallas and rows * hidden * itemsize < _PALLAS_MIN_BYTES:
        return _layer_norm_ref(x, eps)

    x2d = x.reshape(rows, hidden)  # free view: collapses contiguous leading dims

    target_block_bytes, vmem_limit_bytes, min_grid_steps = _tpu_tuning()
    tile_rows = _choose_tile_rows(rows, hidden, x.dtype,
                                  target_block_bytes, min_grid_steps)
    grid = (pl.cdiv(rows, tile_rows),)

    # TODO(synk): for hidden < 128 (toy sizes) output stores are lane-masked
    # (vst.msk); real SSL hidden sizes (>=768) are already lane-dense.
    out = pl.pallas_call(
        functools.partial(_layer_norm_kernel, eps=float(eps),
                          inv_hidden=1.0 / float(hidden)),
        out_shape=jax.ShapeDtypeStruct((rows, hidden), x.dtype),
        grid=grid,
        in_specs=[pl.BlockSpec((tile_rows, hidden), lambda i: (i, 0))],
        out_specs=pl.BlockSpec((tile_rows, hidden), lambda i: (i, 0)),
        compiler_params=pltpu.CompilerParams(
            dimension_semantics=("parallel",),
            vmem_limit_bytes=vmem_limit_bytes,
        ),
    )(x2d)

    return out.reshape(orig_shape)


# ---------------------------------------------------------------------------
# Module port.
# ---------------------------------------------------------------------------
class BaseInterfaceConfig:
    def __init__(self, upstream_layer_num: int, upstream_feat_dim: int,
                 normalize: bool = True):
        self.upstream_layer_num = upstream_layer_num
        self.upstream_feat_dim = upstream_feat_dim
        self.normalize = normalize


class BaseInterface:
    """JAX/Pallas port of BaseInterface (no learnable parameters).

    forward = shape asserts -> optional layer norm (Pallas) -> interface_forward.
    """

    def __init__(self, config: BaseInterfaceConfig):
        self.config = config
        self._output_dim = config.upstream_feat_dim

    @property
    def output_dim(self) -> int:
        return self._output_dim

    def forward(self, stacked_hs: jax.Array) -> jax.Array:
        assert stacked_hs.shape[0] == self.config.upstream_layer_num
        assert stacked_hs.shape[-1] == self.config.upstream_feat_dim
        if self.config.normalize:
            stacked_hs = pallas_layer_norm_last_dim(stacked_hs)
        stacked_hs = self.interface_forward(stacked_hs)
        return stacked_hs

    def interface_forward(self, stacked_hs: jax.Array) -> jax.Array:
        # TODO(synk): interface_forward is abstract (raises NotImplementedError)
        # in the PyTorch base class; identity passthrough here so the
        # normalized hot path is exercised.
        return stacked_hs

    __call__ = forward


if __name__ == "__main__":
    # Shapes implied by the forward: (layer, batch, seq, hidden)
    layer, batch, seq, hidden = 4, 2, 8, 32
    cfg = BaseInterfaceConfig(upstream_layer_num=layer,
                              upstream_feat_dim=hidden,
                              normalize=True)
    module = BaseInterface(cfg)

    key = jax.random.PRNGKey(0)
    k_small, k_big = jax.random.split(key)

    # 1) Module forward at the toy shape (takes the jnp fallback: too small
    #    for the kernel launch overhead to pay off).
    stacked_hs = jax.random.normal(k_small, (layer, batch, seq, hidden),
                                   dtype=jnp.float32)
    out = jax.block_until_ready(module(stacked_hs))
    ref = _layer_norm_ref(stacked_hs, 1e-5)
    assert out.shape == stacked_hs.shape
    assert float(jnp.max(jnp.abs(out - ref))) < 1e-4

    # 2) Exercise the Pallas kernel path: once forced on the toy shape
    #    (full-extent block) and once on a moderate lane-dense shape that
    #    clears the bypass threshold.
    out_k = jax.block_until_ready(
        pallas_layer_norm_last_dim(stacked_hs, force_pallas=True))
    assert float(jnp.max(jnp.abs(out_k - ref))) < 1e-4

    big = jax.random.normal(k_big, (layer, batch, 256, 256), dtype=jnp.float32)
    out_b = jax.block_until_ready(pallas_layer_norm_last_dim(big))
    ref_b = _layer_norm_ref(big, 1e-5)
    assert out_b.shape == big.shape
    assert float(jnp.max(jnp.abs(out_b - ref_b))) < 1e-4

    print("KERNEL_OK")
</pallas_src>

<mosaic_0001>
module attributes {stable_mosaic.version = 11 : i64} {
  func.func @_layer_norm_kernel(%arg0: i32, %arg1: memref<64x32xf32, #tpu.memory_space<vmem>>, %arg2: memref<64x32xf32, #tpu.memory_space<vmem>>) attributes {dimension_semantics = [#tpu.dimension_semantics<parallel>], iteration_bounds = array<i64: 1>, scalar_prefetch = 0 : i64, scratch_operands = 0 : i64, tpu.core_type = #tpu.core_type<tc>, window_params = [{transform_indices = @transform_0, window_bounds = array<i64: 64, 32>}, {transform_indices = @transform_1, window_bounds = array<i64: 64, 32>}]} {
    %c0 = arith.constant 0 : index
    %c0_0 = arith.constant 0 : index
    %0 = vector.load %arg1[%c0, %c0_0] : memref<64x32xf32, #tpu.memory_space<vmem>>, vector<64x32xf32>
    %cst = arith.constant dense<0.000000e+00> : vector<64xf32>
    %1 = vector.multi_reduction <add>, %0, %cst [1] : vector<64x32xf32> to vector<64xf32>
    %2 = vector.shape_cast %1 : vector<64xf32> to vector<64x1xf32>
    %3 = arith.mulf %0, %0 : vector<64x32xf32>
    %cst_1 = arith.constant dense<0.000000e+00> : vector<64xf32>
    %4 = vector.multi_reduction <add>, %3, %cst_1 [1] : vector<64x32xf32> to vector<64xf32>
    %5 = vector.shape_cast %4 : vector<64xf32> to vector<64x1xf32>
    %cst_2 = arith.constant 3.125000e-02 : f32
    %6 = vector.broadcast %cst_2 : f32 to vector<64x1xf32>
    %7 = arith.mulf %2, %6 : vector<64x1xf32>
    %cst_3 = arith.constant 3.125000e-02 : f32
    %8 = vector.broadcast %cst_3 : f32 to vector<64x1xf32>
    %9 = arith.mulf %5, %8 : vector<64x1xf32>
    %10 = arith.mulf %7, %7 : vector<64x1xf32>
    %11 = arith.subf %9, %10 : vector<64x1xf32>
    %cst_4 = arith.constant 0.000000e+00 : f32
    %12 = vector.broadcast %cst_4 : f32 to vector<64x1xf32>
    %13 = arith.maximumf %11, %12 : vector<64x1xf32>
    %cst_5 = arith.constant 9.99999974E-6 : f32
    %14 = vector.broadcast %cst_5 : f32 to vector<64x1xf32>
    %15 = arith.addf %13, %14 : vector<64x1xf32>
    %16 = math.rsqrt %15 : vector<64x1xf32>
    %17 = vector.broadcast %7 : vector<64x1xf32> to vector<64x32xf32>
    %18 = arith.subf %0, %17 : vector<64x32xf32>
    %19 = vector.broadcast %16 : vector<64x1xf32> to vector<64x32xf32>
    %20 = arith.mulf %18, %19 : vector<64x32xf32>
    %c0_6 = arith.constant 0 : index
    %c0_7 = arith.constant 0 : index
    %21 = vector.load %arg2[%c0_6, %c0_7] : memref<64x32xf32, #tpu.memory_space<vmem>>, vector<64x32xf32>
    tpu.vector_store %arg2[%c0_6, %c0_7], %20 {strides = array<i32>} : memref<64x32xf32, #tpu.memory_space<vmem>>, vector<64x32xf32>,
    return
  }
  func.func @transform_0(%arg0: i32) -> (i32, i32) {
    %c0_i32 = arith.constant 0 : i32
    %c0_i32_0 = arith.constant 0 : i32
    return %arg0, %c0_i32 : i32, i32
  }
  func.func @transform_1(%arg0: i32) -> (i32, i32) {
    %c0_i32 = arith.constant 0 : i32
    %c0_i32_0 = arith.constant 0 : i32
    return %arg0, %c0_i32 : i32, i32
  }
}

</mosaic_0001>

<llo_original>
// kernel: tpu_custom_call.1
$region0: #{tpu_custom_call.1}
  #allocation0 [shape = 'u32[]', space=smem, size = 0x4, offset = 0x4, fixed_abs, tag = 'smem constant byte address 0x4 - core index']
  #allocation1 [shape = 'u32[72,128]{1,0:T(1,128)}', space=vmem, size = 0x9000, scoped, tag = 'internal scratch']
  %s0 = inlined_call_operand.vmem [shape: f32[64,32], index: 0, kind: input, shape index: {}]
  %s1 = inlined_call_operand.vmem [shape: f32[64,32], index: 1, kind: output, shape index: {}]
  %s2 = sld [smem:[#allocation0]]
  $region14: #{tpu_custom_call.1} parent=0
    _
  %s4 = ssub.s32 1, %s2
  %s5 = scalar_select 0, %s4, %s2
  // Predicated region
  $region2: #{tpu_custom_call.1} parent=0 // pred_check
    _
  $region3: #{tpu_custom_call.1} parent=0 // pred_check_branch
    %7 = sbr.rel (0) target = $region5
  $region4: #{tpu_custom_call.1} parent=0 // pred_region
    _
  $region5: #{tpu_custom_call.1} parent=0 // pred_fallthru
    _
  %v8 = vld [vmem:[%s0] sm:$0xff]
  %v9 = vld [vmem:[%s0 + $0x8] sm:$0xff]
  %v10 = vld [vmem:[%s0 + $0x10] sm:$0xff]
  %v11 = vld [vmem:[%s0 + $0x18] sm:$0xff]
  %v12 = vld [vmem:[%s0 + $0x20] sm:$0xff]
  %v13 = vld [vmem:[%s0 + $0x28] sm:$0xff]
  %v14 = vld [vmem:[%s0 + $0x30] sm:$0xff]
  %v15 = vld [vmem:[%s0 + $0x38] sm:$0xff]
  %vm16 = vcmask 261120
  %v17 = vsel %vm16, %v8, 0.0
  %18 = vadd.xlane.f32.xlu0 %v17
  %v19 = vpop.xlane.xlu0 %18
  %v20 = vsel %vm16, %v9, 0.0
  %21 = vadd.xlane.f32.xlu0 %v20
  %v22 = vpop.xlane.xlu0 %21
  %v23 = vsel %vm16, %v10, 0.0
  %24 = vadd.xlane.f32.xlu0 %v23
  %v25 = vpop.xlane.xlu0 %24
  %v26 = vsel %vm16, %v11, 0.0
  %27 = vadd.xlane.f32.xlu0 %v26
  %v28 = vpop.xlane.xlu0 %27
  %v29 = vsel %vm16, %v12, 0.0
  %30 = vadd.xlane.f32.xlu0 %v29
  %v31 = vpop.xlane.xlu0 %30
  %v32 = vsel %vm16, %v13, 0.0
  %33 = vadd.xlane.f32.xlu0 %v32
  %v34 = vpop.xlane.xlu0 %33
  %v35 = vsel %vm16, %v14, 0.0
  %36 = vadd.xlane.f32.xlu0 %v35
  %v37 = vpop.xlane.xlu0 %36
  %v38 = vsel %vm16, %v15, 0.0
  %39 = vadd.xlane.f32.xlu0 %v38
  %v40 = vpop.xlane.xlu0 %39
  %v41 = vmul.f32 %v8, %v8
  %v42 = vmul.f32 %v9, %v9
  %v43 = vmul.f32 %v10, %v10
  %v44 = vmul.f32 %v11, %v11
  %v45 = vmul.f32 %v12, %v12
  %v46 = vmul.f32 %v13, %v13
  %v47 = vmul.f32 %v14, %v14
  %v48 = vmul.f32 %v15, %v15
  %v49 = vsel %vm16, %v41, 0.0
  %50 = vadd.xlane.f32.xlu0 %v49
  %v51 = vpop.xlane.xlu0 %50
  %v52 = vsel %vm16, %v42, 0.0
  %53 = vadd.xlane.f32.xlu0 %v52
  %v54 = vpop.xlane.xlu0 %53
  %v55 = vsel %vm16, %v43, 0.0
  %56 = vadd.xlane.f32.xlu0 %v55
  %v57 = vpop.xlane.xlu0 %56
  %v58 = vsel %vm16, %v44, 0.0
  %59 = vadd.xlane.f32.xlu0 %v58
  %v60 = vpop.xlane.xlu0 %59
  %v61 = vsel %vm16, %v45, 0.0
  %62 = vadd.xlane.f32.xlu0 %v61
  %v63 = vpop.xlane.xlu0 %62
  %v64 = vsel %vm16, %v46, 0.0
  %65 = vadd.xlane.f32.xlu0 %v64
  %v66 = vpop.xlane.xlu0 %65
  %v67 = vsel %vm16, %v47, 0.0
  %68 = vadd.xlane.f32.xlu0 %v67
  %v69 = vpop.xlane.xlu0 %68
  %v70 = vsel %vm16, %v48, 0.0
  %71 = vadd.xlane.f32.xlu0 %v70
  %v72 = vpop.xlane.xlu0 %71
  %v73 = vmul.f32 %v19, 0.03125
  %v74 = vmul.f32 %v22, 0.03125
  %v75 = vmul.f32 %v25, 0.03125
  %v76 = vmul.f32 %v28, 0.03125
  %v77 = vmul.f32 %v31, 0.03125
  %v78 = vmul.f32 %v34, 0.03125
  %v79 = vmul.f32 %v37, 0.03125
  %v80 = vmul.f32 %v40, 0.03125
  %v81 = vmul.f32 %v51, 0.03125
  %v82 = vmul.f32 %v54, 0.03125
  %v83 = vmul.f32 %v57, 0.03125
  %v84 = vmul.f32 %v60, 0.03125
  %v85 = vmul.f32 %v63, 0.03125
  %v86 = vmul.f32 %v66, 0.03125
  %v87 = vmul.f32 %v69, 0.03125
  %v88 = vmul.f32 %v72, 0.03125
  %v89 = vmul.f32 %v73, %v73
  %v90 = vmul.f32 %v74, %v74
  %v91 = vmul.f32 %v75, %v75
  %v92 = vmul.f32 %v76, %v76
  %v93 = vmul.f32 %v77, %v77
  %v94 = vmul.f32 %v78, %v78
  %v95 = vmul.f32 %v79, %v79
  %v96 = vmul.f32 %v80, %v80
  %v97 = vsub.f32 %v81, %v89
  %v98 = vsub.f32 %v82, %v90
  %v99 = vsub.f32 %v83, %v91
  %v100 = vsub.f32 %v84, %v92
  %v101 = vsub.f32 %v85, %v93
  %v102 = vsub.f32 %v86, %v94
  %v103 = vsub.f32 %v87, %v95
  %v104 = vsub.f32 %v88, %v96
  %v105 = vmax.f32 %v97, 0.0
  %v106 = vmax.f32 %v98, 0.0
  %v107 = vmax.f32 %v99, 0.0
  %v108 = vmax.f32 %v100, 0.0
  %v109 = vmax.f32 %v101, 0.0
  %v110 = vmax.f32 %v102, 0.0
  %v111 = vmax.f32 %v103, 0.0
  %v112 = vmax.f32 %v104, 0.0
  %v113 = vadd.f32 %v105, 1e-05
  %v114 = vadd.f32 %v106, 1e-05
  %v115 = vadd.f32 %v107, 1e-05
  %v116 = vadd.f32 %v108, 1e-05
  %v117 = vadd.f32 %v109, 1e-05
  %v118 = vadd.f32 %v110, 1e-05
  %v119 = vadd.f32 %v111, 1e-05
  %v120 = vadd.f32 %v112, 1e-05
  %v121 = vrsqrt.pop %v113
  %v122 = vmul.f32 %v121, %v113
  %v123 = vmul.f32 %v122, %v121
  %v124 = vmul.f32 0.5, %v123
  %v125 = vsub.f32 1.5, %v124
  %v126 = vmul.f32 %v121, %v125
  %vm127 = vweird.f32 %v113
  %vm128 = vweird.f32 %v121
  %vm129 = vmor %vm127, %vm128
  %v130 = vsel %vm129, %v121, %v126
  %v131 = vrsqrt.pop %v114
  %v132 = vmul.f32 %v131, %v114
  %v133 = vmul.f32 %v132, %v131
  %v134 = vmul.f32 0.5, %v133
  %v135 = vsub.f32 1.5, %v134
  %v136 = vmul.f32 %v131, %v135
  %vm137 = vweird.f32 %v114
  %vm138 = vweird.f32 %v131
  %vm139 = vmor %vm137, %vm138
  %v140 = vsel %vm139, %v131, %v136
  %v141 = vrsqrt.pop %v115
  %v142 = vmul.f32 %v141, %v115
  %v143 = vmul.f32 %v142, %v141
  %v144 = vmul.f32 0.5, %v143
  %v145 = vsub.f32 1.5, %v144
  %v146 = vmul.f32 %v141, %v145
  %vm147 = vweird.f32 %v115
  %vm148 = vweird.f32 %v141
  %vm149 = vmor %vm147, %vm148
  %v150 = vsel %vm149, %v141, %v146
  %v151 = vrsqrt.pop %v116
  %v152 = vmul.f32 %v151, %v116
  %v153 = vmul.f32 %v152, %v151
  %v154 = vmul.f32 0.5, %v153
  %v155 = vsub.f32 1.5, %v154
  %v156 = vmul.f32 %v151, %v155
  %vm157 = vweird.f32 %v116
  %vm158 = vweird.f32 %v151
  %vm159 = vmor %vm157, %vm158
  %v160 = vsel %vm159, %v151, %v156
  %v161 = vrsqrt.pop %v117
  %v162 = vmul.f32 %v161, %v117
  %v163 = vmul.f32 %v162, %v161
  %v164 = vmul.f32 0.5, %v163
  %v165 = vsub.f32 1.5, %v164
  %v166 = vmul.f32 %v161, %v165
  %vm167 = vweird.f32 %v117
  %vm168 = vweird.f32 %v161
  %vm169 = vmor %vm167, %vm168
  %v170 = vsel %vm169, %v161, %v166
  %v171 = vrsqrt.pop %v118
  %v172 = vmul.f32 %v171, %v118
  %v173 = vmul.f32 %v172, %v171
  %v174 = vmul.f32 0.5, %v173
  %v175 = vsub.f32 1.5, %v174
  %v176 = vmul.f32 %v171, %v175
  %vm177 = vweird.f32 %v118
  %vm178 = vweird.f32 %v171
  %vm179 = vmor %vm177, %vm178
  %v180 = vsel %vm179, %v171, %v176
  %v181 = vrsqrt.pop %v119
  %v182 = vmul.f32 %v181, %v119
  %v183 = vmul.f32 %v182, %v181
  %v184 = vmul.f32 0.5, %v183
  %v185 = vsub.f32 1.5, %v184
  %v186 = vmul.f32 %v181, %v185
  %vm187 = vweird.f32 %v119
  %vm188 = vweird.f32 %v181
  %vm189 = vmor %vm187, %vm188
  %v190 = vsel %vm189, %v181, %v186
  %v191 = vrsqrt.pop %v120
  %v192 = vmul.f32 %v191, %v120
  %v193 = vmul.f32 %v192, %v191
  %v194 = vmul.f32 0.5, %v193
  %v195 = vsub.f32 1.5, %v194
  %v196 = vmul.f32 %v191, %v195
  %vm197 = vweird.f32 %v120
  %vm198 = vweird.f32 %v191
  %vm199 = vmor %vm197, %vm198
  %v200 = vsel %vm199, %v191, %v196
  %v201 = vsub.f32 %v8, %v73
  %v202 = vsub.f32 %v9, %v74
  %v203 = vsub.f32 %v10, %v75
  %v204 = vsub.f32 %v11, %v76
  %v205 = vsub.f32 %v12, %v77
  %v206 = vsub.f32 %v13, %v78
  %v207 = vsub.f32 %v14, %v79
  %v208 = vsub.f32 %v15, %v80
  %v209 = vmul.f32 %v201, %v130
  %v210 = vmul.f32 %v202, %v140
  %v211 = vmul.f32 %v203, %v150
  %v212 = vmul.f32 %v204, %v160
  %v213 = vmul.f32 %v205, %v170
  %v214 = vmul.f32 %v206, %v180
  %v215 = vmul.f32 %v207, %v190
  %v216 = vmul.f32 %v208, %v200
  %217 = vst.msk [vmem:[%s1] sm:$0xff] %vm16, %v209
  %218 = vst.msk [vmem:[%s1 + $0x8] sm:$0xff] %vm16, %v210
  %219 = vst.msk [vmem:[%s1 + $0x10] sm:$0xff] %vm16, %v211
  %220 = vst.msk [vmem:[%s1 + $0x18] sm:$0xff] %vm16, %v212
  %221 = vst.msk [vmem:[%s1 + $0x20] sm:$0xff] %vm16, %v213
  %222 = vst.msk [vmem:[%s1 + $0x28] sm:$0xff] %vm16, %v214
  %223 = vst.msk [vmem:[%s1 + $0x30] sm:$0xff] %vm16, %v215
  %224 = vst.msk [vmem:[%s1 + $0x38] sm:$0xff] %vm16, %v216
  // Predicated region
  $region6: #{tpu_custom_call.1} parent=0 // pred_check
    _
  $region7: #{tpu_custom_call.1} parent=0 // pred_check_branch
    %226 = sbr.rel (0) target = $region9
  $region8: #{tpu_custom_call.1} parent=0 // pred_region
    _
  $region9: #{tpu_custom_call.1} parent=0 // pred_fallthru
    _
  // Predicated region
  $region10: #{tpu_custom_call.1} parent=0 // pred_check
    _
  $region11: #{tpu_custom_call.1} parent=0 // pred_check_branch
    %228 = sbr.rel (0) target = $region13
  $region12: #{tpu_custom_call.1} parent=0 // pred_region
    _
  $region13: #{tpu_custom_call.1} parent=0 // pred_fallthru
    _

</llo_original>
